<compile_context>
chip_gen: v5e
topology: v5e:2x2
jax: 0.10.0
libtpu: 0.0.40
codegen_flags: <defaults>
</compile_context>

<pallas_src>
import functools
import re

import jax
import jax.numpy as jnp
from jax.experimental import pallas as pl
from jax.experimental.pallas import tpu as pltpu


def _round_up(n, m):
    return ((n + m - 1) // m) * m


def _tpu_config(chip_gen=None):
    """Per-generation tiling knobs."""
    if chip_gen is None:
        kind = ""
        try:
            kind = jax.devices()[0].device_kind.lower()
        except Exception:
            pass
        m = re.search(r"v(\d+)", kind)
        chip_gen = int(m.group(1)) if m else 0

    if chip_gen >= 7:
        # v7x: 64 MiB physical / 32 MiB scoped VMEM, 2 TensorCores, bf16 VPU.
        return dict(desired_block_b=4096, vmem_budget_bytes=20 * 1024 * 1024,
                    vmem_limit_bytes=32 * 1024 * 1024, num_tensorcores=2,
                    ew_dtype=jnp.bfloat16)
    if chip_gen == 6:
        # v6e: 128 MiB VMEM, 1 TensorCore, bf16 VPU.
        return dict(desired_block_b=8192, vmem_budget_bytes=48 * 1024 * 1024,
                    vmem_limit_bytes=64 * 1024 * 1024, num_tensorcores=1,
                    ew_dtype=jnp.bfloat16)
    if chip_gen == 5:
        # v5e: 128 MiB VMEM, 1 TensorCore, no bf16 VPU -> keep elementwise in f32.
        return dict(desired_block_b=8192, vmem_budget_bytes=48 * 1024 * 1024,
                    vmem_limit_bytes=64 * 1024 * 1024, num_tensorcores=1,
                    ew_dtype=jnp.float32)
    # Unknown / older generation: conservative defaults.
    return dict(desired_block_b=2048, vmem_budget_bytes=12 * 1024 * 1024,
                vmem_limit_bytes=32 * 1024 * 1024, num_tensorcores=1,
                ew_dtype=jnp.float32)


def _mlp_kernel(x_ref,
                w1_ref, b1_ref,
                w2_ref, b2_ref,
                w3_ref, b3_ref,
                w4_ref, b4_ref,
                o_ref, *, ew_dtype):
    """One batch tile of the fused MLP, feature-major in VMEM.

    wN: (outN, inN) bf16 (PyTorch layout).  bN: (outN, 1) column vectors in the
    elementwise dtype (b4 stays f32 for the sigmoid).  Every activation is
    (width, block_b): block_b is on the 128-lane axis, so all elementwise
    passes and stored activations are lane-dense.
    """
    zero = jnp.zeros((), dtype=ew_dtype)

    # dense1 + ReLU: contract x's last (feature) dim against w1's last dim,
    # producing h1^T = (4H, block_b) without transposing x in HBM.
    x = x_ref[...].astype(jnp.bfloat16)
    acc = jax.lax.dot_general(w1_ref[...], x,
                              dimension_numbers=(((1,), (1,)), ((), ())),
                              preferred_element_type=jnp.float32)
    h = jnp.maximum(acc.astype(ew_dtype) + b1_ref[...], zero)

    # dense2 + ReLU
    acc = jnp.dot(w2_ref[...], h.astype(jnp.bfloat16),
                  preferred_element_type=jnp.float32)
    h = jnp.maximum(acc.astype(ew_dtype) + b2_ref[...], zero)

    # dense3 + ReLU
    acc = jnp.dot(w3_ref[...], h.astype(jnp.bfloat16),
                  preferred_element_type=jnp.float32)
    h = jnp.maximum(acc.astype(ew_dtype) + b3_ref[...], zero)

    # dense4 + Sigmoid: (1, H) @ (H, block_b) -> lane-dense (1, block_b) row.
    logits = jnp.dot(w4_ref[...], h.astype(jnp.bfloat16),
                     preferred_element_type=jnp.float32)
    o_ref[...] = jax.nn.sigmoid(logits + b4_ref[...]).astype(o_ref.dtype)


def _bytes_per_batch_row(input_dim, hidden_dim, ew_bytes):
    """Lane-padding-aware VMEM bytes per batch row of one tile."""
    lane_pad = lambda n: _round_up(n, 128)
    # x tile: double-buffered (block_b, input_dim) input (assume f32); its minor
    # (feature) dim is lane-padded to 128 in VMEM; plus the bf16 working copy.
    total = 2 * lane_pad(input_dim) * 4 + lane_pad(input_dim) * 2
    # Transposed activations (width, block_b): block_b is the dense lane axis;
    # count f32 MXU accumulator + elementwise result + bf16 copy per layer.
    for width in (4 * hidden_dim, 2 * hidden_dim, hidden_dim):
        total += _round_up(width, 8) * (4 + ew_bytes + 2)
    # (1, block_b) output, sublane-padded to 8 rows, double-buffered.
    total += 2 * 8 * 4
    return total


def _choose_block_b(batch, input_dim, hidden_dim, *, desired, vmem_budget_bytes,
                    num_tensorcores, ew_bytes):
    """Pick (block_b, num_tiles): the biggest lane-dense tile that fits the VMEM
    budget; on multi-TC chips keep the tile count a multiple of the TC count."""
    bpr = _bytes_per_batch_row(input_dim, hidden_dim, ew_bytes)
    fit = max((vmem_budget_bytes // bpr) // 128 * 128, 128)
    b_pad = _round_up(batch, 128)
    block_b = max(128, min(desired, fit, b_pad))
    block_b = (block_b // 128) * 128
    num_tiles = pl.cdiv(b_pad, block_b)
    if num_tensorcores > 1 and b_pad >= num_tensorcores * 128:
        # Even split across TensorCores: no idle core on a tail step.
        num_tiles = _round_up(num_tiles, num_tensorcores)
        block_b = min(block_b,
                      max(128, _round_up(pl.cdiv(b_pad, num_tiles), 128)))
    return block_b, num_tiles


def prepare_params(torch_layout_params, *, ew_dtype=None, chip_gen=None):
    """One-time conversion (hoisted out of the forward path):
    weights (out, in) -> bf16; biases -> (out, 1) columns in the elementwise
    dtype (bf16 on v6e/v7x, f32 on v5e); b4 stays f32 for the final sigmoid."""
    if ew_dtype is None:
        ew_dtype = _tpu_config(chip_gen)["ew_dtype"]
    out = {}
    for idx in range(1, 5):
        w = jnp.asarray(torch_layout_params[f"w{idx}"])
        b = jnp.asarray(torch_layout_params[f"b{idx}"]).reshape(-1, 1)
        out[f"w{idx}"] = w.astype(jnp.bfloat16)
        out[f"b{idx}"] = b.astype(jnp.float32 if idx == 4 else ew_dtype)
    return out


def trucles_linear_new_forward(x, params, *, chip_gen=None):
    """x: (B, input_dim), any float dtype (pass bf16 on v5e to halve the HBM
    stream).  params: output of prepare_params()."""
    cfg = _tpu_config(chip_gen)
    B, input_dim = x.shape
    hidden_dim = params["w3"].shape[0]            # w3: (H, 2H) PyTorch layout
    ew_dtype = params["b1"].dtype                 # baked at prepare_params time
    ew_bytes = jnp.dtype(ew_dtype).itemsize

    block_b, num_tiles = _choose_block_b(
        B, input_dim, hidden_dim,
        desired=cfg["desired_block_b"],
        vmem_budget_bytes=cfg["vmem_budget_bytes"],
        num_tensorcores=cfg["num_tensorcores"],
        ew_bytes=ew_bytes)
    b_pad = num_tiles * block_b
    if b_pad != B:                                # ragged batch: pad, slice off after
        x = jnp.pad(x, ((0, b_pad - B), (0, 0)))

    w1, b1 = params["w1"], params["b1"]
    w2, b2 = params["w2"], params["b2"]
    w3, b3 = params["w3"], params["b3"]
    w4, b4 = params["w4"], params["b4"]

    # Grid-invariant weight/bias blocks (tiny at these widths).
    full = lambda arr: pl.BlockSpec(arr.shape, lambda i: (0, 0))

    out = pl.pallas_call(
        functools.partial(_mlp_kernel, ew_dtype=ew_dtype),
        # Lane-dense output slab: one (1, block_b) row per grid step.
        out_shape=jax.ShapeDtypeStruct((1, b_pad), x.dtype),
        grid_spec=pltpu.PrefetchScalarGridSpec(
            num_scalar_prefetch=0,
            grid=(num_tiles,),
            in_specs=[
                pl.BlockSpec((block_b, input_dim), lambda i: (i, 0)),  # x tile
                full(w1), full(b1),
                full(w2), full(b2),
                full(w3), full(b3),
                full(w4), full(b4),
            ],
            out_specs=pl.BlockSpec((1, block_b), lambda i: (0, i)),
        ),
        compiler_params=pltpu.CompilerParams(
            dimension_semantics=("parallel",),
            vmem_limit_bytes=cfg["vmem_limit_bytes"],
        ),
    )(x, w1, b1, w2, b2, w3, b3, w4, b4)

    # Padded rows carry garbage sigmoid values; slice them off here.
    return out[0, :B].reshape(B, 1)


def init_params(key, input_dim, hidden_dim, dtype=jnp.float32):
    """nn.Linear default init (uniform +-1/sqrt(fan_in)); PyTorch (out, in) layout."""
    dims = [
        (input_dim, hidden_dim * 4),
        (hidden_dim * 4, hidden_dim * 2),
        (hidden_dim * 2, hidden_dim),
        (hidden_dim, 1),
    ]
    params = {}
    keys = jax.random.split(key, 2 * len(dims))
    for idx, (fan_in, fan_out) in enumerate(dims):
        bound = 1.0 / jnp.sqrt(jnp.asarray(fan_in, dtype))
        params[f"w{idx + 1}"] = jax.random.uniform(
            keys[2 * idx], (fan_out, fan_in), dtype, minval=-bound, maxval=bound)
        params[f"b{idx + 1}"] = jax.random.uniform(
            keys[2 * idx + 1], (fan_out,), dtype, minval=-bound, maxval=bound)
    return params


def reference_forward(x, params):
    h = jnp.maximum(x @ params["w1"].T + params["b1"], 0.0)
    h = jnp.maximum(h @ params["w2"].T + params["b2"], 0.0)
    h = jnp.maximum(h @ params["w3"].T + params["b3"], 0.0)
    return jax.nn.sigmoid(h @ params["w4"].T + params["b4"])


if __name__ == "__main__":
    key = jax.random.PRNGKey(0)
    k_x, k_p, k_x2 = jax.random.split(key, 3)

    input_dim = 32
    hidden_dim = 32
    torch_params = init_params(k_p, input_dim, hidden_dim)
    # One-time bf16 conversion, hoisted out of the forward path.
    params = prepare_params(torch_params)

    # Small shape consistent with the module (batch=8, features=32).
    x = jax.random.normal(k_x, (8, input_dim), jnp.float32)
    out = jax.block_until_ready(trucles_linear_new_forward(x, params))
    ref = reference_forward(x, torch_params)
    assert out.shape == (8, 1), out.shape
    assert jnp.allclose(out, ref, atol=2e-2, rtol=2e-2), \
        float(jnp.max(jnp.abs(out - ref)))

    # Ragged, multi-tile batch: exercises padding and the parallel grid split.
    x2 = jax.random.normal(k_x2, (300, input_dim), jnp.float32)
    out2 = jax.block_until_ready(trucles_linear_new_forward(x2, params))
    ref2 = reference_forward(x2, torch_params)
    assert out2.shape == (300, 1), out2.shape
    assert jnp.allclose(out2, ref2, atol=2e-2, rtol=2e-2), \
        float(jnp.max(jnp.abs(out2 - ref2)))

    print("KERNEL_OK")
</pallas_src>

<mosaic_0001>
module attributes {stable_mosaic.version = 11 : i64} {
  func.func @_mlp_kernel(%arg0: i32, %arg1: memref<128x32xf32, #tpu.memory_space<vmem>>, %arg2: memref<128x32xbf16, #tpu.memory_space<vmem>>, %arg3: memref<128x1xf32, #tpu.memory_space<vmem>>, %arg4: memref<64x128xbf16, #tpu.memory_space<vmem>>, %arg5: memref<64x1xf32, #tpu.memory_space<vmem>>, %arg6: memref<32x64xbf16, #tpu.memory_space<vmem>>, %arg7: memref<32x1xf32, #tpu.memory_space<vmem>>, %arg8: memref<1x32xbf16, #tpu.memory_space<vmem>>, %arg9: memref<1x1xf32, #tpu.memory_space<vmem>>, %arg10: memref<1x128xf32, #tpu.memory_space<vmem>>) attributes {dimension_semantics = [#tpu.dimension_semantics<parallel>], iteration_bounds = array<i64: 1>, scalar_prefetch = 0 : i64, scratch_operands = 0 : i64, tpu.core_type = #tpu.core_type<tc>, window_params = [{transform_indices = @transform_0, window_bounds = array<i64: 128, 32>}, {pipeline_mode = #tpu.pipeline_mode<synchronous>, transform_indices = @transform_1, window_bounds = array<i64: 128, 32>}, {pipeline_mode = #tpu.pipeline_mode<synchronous>, transform_indices = @transform_2, window_bounds = array<i64: 128, 1>}, {pipeline_mode = #tpu.pipeline_mode<synchronous>, transform_indices = @transform_3, window_bounds = array<i64: 64, 128>}, {pipeline_mode = #tpu.pipeline_mode<synchronous>, transform_indices = @transform_4, window_bounds = array<i64: 64, 1>}, {pipeline_mode = #tpu.pipeline_mode<synchronous>, transform_indices = @transform_5, window_bounds = array<i64: 32, 64>}, {pipeline_mode = #tpu.pipeline_mode<synchronous>, transform_indices = @transform_6, window_bounds = array<i64: 32, 1>}, {pipeline_mode = #tpu.pipeline_mode<synchronous>, transform_indices = @transform_7, window_bounds = array<i64: 1, 32>}, {pipeline_mode = #tpu.pipeline_mode<synchronous>, transform_indices = @transform_8, window_bounds = array<i64: 1, 1>}, {transform_indices = @transform_9, window_bounds = array<i64: 1, 128>}]} {
    %c0 = arith.constant 0 : index
    %c0_0 = arith.constant 0 : index
    %0 = vector.load %arg1[%c0, %c0_0] : memref<128x32xf32, #tpu.memory_space<vmem>>, vector<128x32xf32>
    %1 = arith.truncf %0 : vector<128x32xf32> to vector<128x32xbf16>
    %c0_1 = arith.constant 0 : index
    %c0_2 = arith.constant 0 : index
    %2 = vector.load %arg2[%c0_1, %c0_2] : memref<128x32xbf16, #tpu.memory_space<vmem>>, vector<128x32xbf16>
    %cst = arith.constant dense<0.000000e+00> : vector<128x128xf32>
    %3 = tpu.matmul %2, %1, %cst {dimension_numbers = #tpu.dot_dimension_numbers<[1], [1], [0], [0], [0, 0, 1, 0], [], []>} : vector<128x32xbf16>, vector<128x32xbf16>, vector<128x128xf32> -> vector<128x128xf32>
    %c0_3 = arith.constant 0 : index
    %c0_4 = arith.constant 0 : index
    %4 = vector.load %arg3[%c0_3, %c0_4] : memref<128x1xf32, #tpu.memory_space<vmem>>, vector<128x1xf32>
    %5 = vector.broadcast %4 : vector<128x1xf32> to vector<128x128xf32>
    %6 = arith.addf %3, %5 : vector<128x128xf32>
    %cst_5 = arith.constant 0.000000e+00 : f32
    %7 = vector.broadcast %cst_5 : f32 to vector<128x128xf32>
    %8 = arith.maximumf %6, %7 : vector<128x128xf32>
    %c0_6 = arith.constant 0 : index
    %c0_7 = arith.constant 0 : index
    %9 = vector.load %arg4[%c0_6, %c0_7] : memref<64x128xbf16, #tpu.memory_space<vmem>>, vector<64x128xbf16>
    %10 = arith.truncf %8 : vector<128x128xf32> to vector<128x128xbf16>
    %cst_8 = arith.constant dense<0.000000e+00> : vector<64x128xf32>
    %11 = tpu.matmul %9, %10, %cst_8 {dimension_numbers = #tpu.dot_dimension_numbers<[1], [0], [0], [1], [0, 0, 1, 1], [], []>} : vector<64x128xbf16>, vector<128x128xbf16>, vector<64x128xf32> -> vector<64x128xf32>
    %c0_9 = arith.constant 0 : index
    %c0_10 = arith.constant 0 : index
    %12 = vector.load %arg5[%c0_9, %c0_10] : memref<64x1xf32, #tpu.memory_space<vmem>>, vector<64x1xf32>
    %13 = vector.broadcast %12 : vector<64x1xf32> to vector<64x128xf32>
    %14 = arith.addf %11, %13 : vector<64x128xf32>
    %cst_11 = arith.constant 0.000000e+00 : f32
    %15 = vector.broadcast %cst_11 : f32 to vector<64x128xf32>
    %16 = arith.maximumf %14, %15 : vector<64x128xf32>
    %c0_12 = arith.constant 0 : index
    %c0_13 = arith.constant 0 : index
    %17 = vector.load %arg6[%c0_12, %c0_13] : memref<32x64xbf16, #tpu.memory_space<vmem>>, vector<32x64xbf16>
    %18 = arith.truncf %16 : vector<64x128xf32> to vector<64x128xbf16>
    %cst_14 = arith.constant dense<0.000000e+00> : vector<32x128xf32>
    %19 = tpu.matmul %17, %18, %cst_14 {dimension_numbers = #tpu.dot_dimension_numbers<[1], [0], [0], [1], [0, 0, 1, 1], [], []>} : vector<32x64xbf16>, vector<64x128xbf16>, vector<32x128xf32> -> vector<32x128xf32>
    %c0_15 = arith.constant 0 : index
    %c0_16 = arith.constant 0 : index
    %20 = vector.load %arg7[%c0_15, %c0_16] : memref<32x1xf32, #tpu.memory_space<vmem>>, vector<32x1xf32>
    %21 = vector.broadcast %20 : vector<32x1xf32> to vector<32x128xf32>
    %22 = arith.addf %19, %21 : vector<32x128xf32>
    %cst_17 = arith.constant 0.000000e+00 : f32
    %23 = vector.broadcast %cst_17 : f32 to vector<32x128xf32>
    %24 = arith.maximumf %22, %23 : vector<32x128xf32>
    %c0_18 = arith.constant 0 : index
    %c0_19 = arith.constant 0 : index
    %25 = vector.load %arg8[%c0_18, %c0_19] : memref<1x32xbf16, #tpu.memory_space<vmem>>, vector<1x32xbf16>
    %26 = arith.truncf %24 : vector<32x128xf32> to vector<32x128xbf16>
    %cst_20 = arith.constant dense<0.000000e+00> : vector<1x128xf32>
    %27 = tpu.matmul %25, %26, %cst_20 {dimension_numbers = #tpu.dot_dimension_numbers<[1], [0], [0], [1], [0, 0, 1, 1], [], []>} : vector<1x32xbf16>, vector<32x128xbf16>, vector<1x128xf32> -> vector<1x128xf32>
    %c0_21 = arith.constant 0 : index
    %c0_22 = arith.constant 0 : index
    %28 = vector.load %arg9[%c0_21, %c0_22] : memref<1x1xf32, #tpu.memory_space<vmem>>, vector<1x1xf32>
    %29 = vector.broadcast %28 : vector<1x1xf32> to vector<1x128xf32>
    %30 = arith.addf %27, %29 : vector<1x128xf32>
    %31 = arith.negf %30 : vector<1x128xf32>
    %32 = math.exp %31 : vector<1x128xf32>
    %cst_23 = arith.constant 1.000000e+00 : f32
    %33 = vector.broadcast %cst_23 : f32 to vector<1x128xf32>
    %34 = arith.addf %33, %32 : vector<1x128xf32>
    %35 = arith.divf %33, %34 : vector<1x128xf32>
    %c0_24 = arith.constant 0 : index
    %c0_25 = arith.constant 0 : index
    %36 = vector.load %arg10[%c0_24, %c0_25] : memref<1x128xf32, #tpu.memory_space<vmem>>, vector<1x128xf32>
    tpu.vector_store %arg10[%c0_24, %c0_25], %35 {strides = array<i32>} : memref<1x128xf32, #tpu.memory_space<vmem>>, vector<1x128xf32>,
    return
  }
  func.func @transform_0(%arg0: i32) -> (i32, i32) {
    %c0_i32 = arith.constant 0 : i32
    %c0_i32_0 = arith.constant 0 : i32
    return %arg0, %c0_i32 : i32, i32
  }
  func.func @transform_1(%arg0: i32) -> (i32, i32) {
    %c0_i32 = arith.constant 0 : i32
    %c0_i32_0 = arith.constant 0 : i32
    %c0_i32_1 = arith.constant 0 : i32
    return %c0_i32, %c0_i32_0 : i32, i32
  }
  func.func @transform_2(%arg0: i32) -> (i32, i32) {
    %c0_i32 = arith.constant 0 : i32
    %c0_i32_0 = arith.constant 0 : i32
    %c0_i32_1 = arith.constant 0 : i32
    return %c0_i32, %c0_i32_0 : i32, i32
  }
  func.func @transform_3(%arg0: i32) -> (i32, i32) {
    %c0_i32 = arith.constant 0 : i32
    %c0_i32_0 = arith.constant 0 : i32
    %c0_i32_1 = arith.constant 0 : i32
    return %c0_i32, %c0_i32_0 : i32, i32
  }
  func.func @transform_4(%arg0: i32) -> (i32, i32) {
    %c0_i32 = arith.constant 0 : i32
    %c0_i32_0 = arith.constant 0 : i32
    %c0_i32_1 = arith.constant 0 : i32
    return %c0_i32, %c0_i32_0 : i32, i32
  }
  func.func @transform_5(%arg0: i32) -> (i32, i32) {
    %c0_i32 = arith.constant 0 : i32
    %c0_i32_0 = arith.constant 0 : i32
    %c0_i32_1 = arith.constant 0 : i32
    return %c0_i32, %c0_i32_0 : i32, i32
  }
  func.func @transform_6(%arg0: i32) -> (i32, i32) {
    %c0_i32 = arith.constant 0 : i32
    %c0_i32_0 = arith.constant 0 : i32
    %c0_i32_1 = arith.constant 0 : i32
    return %c0_i32, %c0_i32_0 : i32, i32
  }
  func.func @transform_7(%arg0: i32) -> (i32, i32) {
    %c0_i32 = arith.constant 0 : i32
    %c0_i32_0 = arith.constant 0 : i32
    %c0_i32_1 = arith.constant 0 : i32
    return %c0_i32, %c0_i32_0 : i32, i32
  }
  func.func @transform_8(%arg0: i32) -> (i32, i32) {
    %c0_i32 = arith.constant 0 : i32
    %c0_i32_0 = arith.constant 0 : i32
    %c0_i32_1 = arith.constant 0 : i32
    return %c0_i32, %c0_i32_0 : i32, i32
  }
  func.func @transform_9(%arg0: i32) -> (i32, i32) {
    %c0_i32 = arith.constant 0 : i32
    %c0_i32_0 = arith.constant 0 : i32
    return %c0_i32, %arg0 : i32, i32
  }
}

</mosaic_0001>

<llo_original>
// kernel: tpu_custom_call.1
$region0: #{tpu_custom_call.1}
  #allocation0 [shape = 'u32[]', space=smem, size = 0x4, offset = 0x4, fixed_abs, tag = 'smem constant byte address 0x4 - core index']
  #allocation1 [shape = 'u32[72,128]{1,0:T(1,128)}', space=vmem, size = 0x9000, scoped, tag = 'internal scratch']
  #allocation2 [shape = 'f32[1,1]{1,0:T(1,128)S(1)}', space=vmem, size = 0x200, scoped, tag = 'scoped memory for tpu_custom_call.1']
  %s0 = inlined_call_operand.vmem [shape: f32[128,32], index: 0, kind: input, shape index: {}]
  %s1 = inlined_call_operand.vmem [shape: bf16[128,32], index: 1, kind: input, shape index: {}]
  %s2 = inlined_call_operand.vmem [shape: f32[128,1], index: 2, kind: input, shape index: {}]
  %s3 = inlined_call_operand.vmem [shape: bf16[64,128], index: 3, kind: input, shape index: {}]
  %s4 = inlined_call_operand.vmem [shape: f32[64,1], index: 4, kind: input, shape index: {}]
  %s5 = inlined_call_operand.vmem [shape: bf16[32,64], index: 5, kind: input, shape index: {}]
  %s6 = inlined_call_operand.vmem [shape: f32[32,1], index: 6, kind: input, shape index: {}]
  %s7 = inlined_call_operand.vmem [shape: bf16[1,32], index: 7, kind: input, shape index: {}]
  %s8 = inlined_call_operand.<no memory space> [shape: f32[1,1], index: 8, kind: input, shape index: {}]
  %s9 = inlined_call_operand.hbm [shape: f32[1,128], index: 9, kind: output, shape index: {}]
  %s10 = sld [smem:[#allocation0]]
  $region46: #{tpu_custom_call.1} parent=0
    _
  %s12 = ssub.s32 1, %s10
  %s13 = scalar_select 0, %s12, %s10
  %v14 = vstv %s8
  %15 = vst [vmem:[#allocation2] sm:$0x1] %v14
  $region1: #{tpu_custom_call.1} parent=0
    #allocation3 [shape = 'u8[512]{0}', space=vmem, size = 0x400, scoped, tag = 'output window, operand 0, single buffered']
    #allocation4 [shape = 's32[1]{0}', space=sflag, size = 0x4, scoped, tag = 'scoped memory for tpu_custom_call.1']
    %16 = vsyncpa [#allocation4], 0
    // Predicated region
    $region2: #{tpu_custom_call.1} parent=1 // pred_check
      _
    $region3: #{tpu_custom_call.1} parent=1 // pred_check_branch
      %18 = sbr.rel (0) target = $region5
    $region4: #{tpu_custom_call.1} parent=1 // pred_region
      _
    $region5: #{tpu_custom_call.1} parent=1 // pred_fallthru
      _
    // Predicated region
    $region6: #{tpu_custom_call.1} parent=1 // pred_check
      _
    $region7: #{tpu_custom_call.1} parent=1 // pred_check_branch
      %20 = sbr.rel (0) target = $region9
    $region8: #{tpu_custom_call.1} parent=1 // pred_region
      _
    $region9: #{tpu_custom_call.1} parent=1 // pred_fallthru
      _
    // Predicated region
    $region10: #{tpu_custom_call.1} parent=1 // pred_check
      _
    $region11: #{tpu_custom_call.1} parent=1 // pred_check_branch
      %22 = sbr.rel (0) target = $region13
    $region12: #{tpu_custom_call.1} parent=1 // pred_region
      _
    $region13: #{tpu_custom_call.1} parent=1 // pred_fallthru
      _
    // Predicated region
    $region14: #{tpu_custom_call.1} parent=1 // pred_check
      _
    $region15: #{tpu_custom_call.1} parent=1 // pred_check_branch
      %24 = sbr.rel (0) target = $region17
    $region16: #{tpu_custom_call.1} parent=1 // pred_region
      _
    $region17: #{tpu_custom_call.1} parent=1 // pred_fallthru
      _
    // Predicated region
    $region18: #{tpu_custom_call.1} parent=1 // pred_check
      _
    $region19: #{tpu_custom_call.1} parent=1 // pred_check_branch
      %26 = sbr.rel (0) target = $region21
    $region20: #{tpu_custom_call.1} parent=1 // pred_region
      _
    $region21: #{tpu_custom_call.1} parent=1 // pred_fallthru
      _
    // Predicated region
    $region22: #{tpu_custom_call.1} parent=1 // pred_check
      _
    $region23: #{tpu_custom_call.1} parent=1 // pred_check_branch
      %28 = sbr.rel (0) target = $region25
    $region24: #{tpu_custom_call.1} parent=1 // pred_region
      _
    $region25: #{tpu_custom_call.1} parent=1 // pred_fallthru
      _
    // Predicated region
    $region26: #{tpu_custom_call.1} parent=1 // pred_check
      _
    $region27: #{tpu_custom_call.1} parent=1 // pred_check_branch
      %30 = sbr.rel (0) target = $region29
    $region28: #{tpu_custom_call.1} parent=1 // pred_region
      _
    $region29: #{tpu_custom_call.1} parent=1 // pred_fallthru
      _
    // Predicated region
    $region30: #{tpu_custom_call.1} parent=1 // pred_check
      _
    $region31: #{tpu_custom_call.1} parent=1 // pred_check_branch
      %32 = sbr.rel (0) target = $region33
    $region32: #{tpu_custom_call.1} parent=1 // pred_region
      _
    $region33: #{tpu_custom_call.1} parent=1 // pred_fallthru
      _
    // Predicated region
    $region34: #{tpu_custom_call.1} parent=1 // pred_check
      _
    $region35: #{tpu_custom_call.1} parent=1 // pred_check_branch
      %34 = sbr.rel (0) target = $region37
    $region36: #{tpu_custom_call.1} parent=1 // pred_region
      _
    $region37: #{tpu_custom_call.1} parent=1 // pred_fallthru
      _
    %v36 = vld [vmem:[%s0] sm:$0xff]
    %v37 = vld [vmem:[%s0 + $0x8] sm:$0xff]
    %v38 = vld [vmem:[%s0 + $0x10] sm:$0xff]
    %v39 = vld [vmem:[%s0 + $0x18] sm:$0xff]
    %v40 = vld [vmem:[%s0 + $0x20] sm:$0xff]
    %v41 = vld [vmem:[%s0 + $0x28] sm:$0xff]
    %v42 = vld [vmem:[%s0 + $0x30] sm:$0xff]
    %v43 = vld [vmem:[%s0 + $0x38] sm:$0xff]
    %v44 = vld [vmem:[%s0 + $0x40] sm:$0xff]
    %v45 = vld [vmem:[%s0 + $0x48] sm:$0xff]
    %v46 = vld [vmem:[%s0 + $0x50] sm:$0xff]
    %v47 = vld [vmem:[%s0 + $0x58] sm:$0xff]
    %v48 = vld [vmem:[%s0 + $0x60] sm:$0xff]
    %v49 = vld [vmem:[%s0 + $0x68] sm:$0xff]
    %v50 = vld [vmem:[%s0 + $0x70] sm:$0xff]
    %v51 = vld [vmem:[%s0 + $0x78] sm:$0xff]
    %v52 = vpack.c.bf16 %v37, %v36
    %v53 = vpack.c.bf16 %v39, %v38
    %v54 = vpack.c.bf16 %v41, %v40
    %v55 = vpack.c.bf16 %v43, %v42
    %v56 = vpack.c.bf16 %v45, %v44
    %v57 = vpack.c.bf16 %v47, %v46
    %v58 = vpack.c.bf16 %v49, %v48
    %v59 = vpack.c.bf16 %v51, %v50
    %v60 = vld [vmem:[%s1] sm:$0xf]
    %v61 = vld [vmem:[%s1 + $0x4] sm:$0xf]
    %v62 = vld [vmem:[%s1 + $0x8] sm:$0xf]
    %v63 = vld [vmem:[%s1 + $0xc] sm:$0xf]
    %v64 = vld [vmem:[%s1 + $0x10] sm:$0xf]
    %v65 = vld [vmem:[%s1 + $0x14] sm:$0xf]
    %v66 = vld [vmem:[%s1 + $0x18] sm:$0xf]
    %v67 = vld [vmem:[%s1 + $0x1c] sm:$0xf]
    %v68 = vld [vmem:[%s1 + $0x20] sm:$0xf]
    %v69 = vld [vmem:[%s1 + $0x24] sm:$0xf]
    %v70 = vld [vmem:[%s1 + $0x28] sm:$0xf]
    %v71 = vld [vmem:[%s1 + $0x2c] sm:$0xf]
    %v72 = vld [vmem:[%s1 + $0x30] sm:$0xf]
    %v73 = vld [vmem:[%s1 + $0x34] sm:$0xf]
    %v74 = vld [vmem:[%s1 + $0x38] sm:$0xf]
    %v75 = vld [vmem:[%s1 + $0x3c] sm:$0xf]
    %v76 = vld [vmem:[%s2] sm:$0xff]
    %v77 = vld [vmem:[%s2 + $0x8] sm:$0xff]
    %v78 = vld [vmem:[%s2 + $0x10] sm:$0xff]
    %v79 = vld [vmem:[%s2 + $0x18] sm:$0xff]
    %v80 = vld [vmem:[%s2 + $0x20] sm:$0xff]
    %v81 = vld [vmem:[%s2 + $0x28] sm:$0xff]
    %v82 = vld [vmem:[%s2 + $0x30] sm:$0xff]
    %v83 = vld [vmem:[%s2 + $0x38] sm:$0xff]
    %v84 = vld [vmem:[%s2 + $0x40] sm:$0xff]
    %v85 = vld [vmem:[%s2 + $0x48] sm:$0xff]
    %v86 = vld [vmem:[%s2 + $0x50] sm:$0xff]
    %v87 = vld [vmem:[%s2 + $0x58] sm:$0xff]
    %v88 = vld [vmem:[%s2 + $0x60] sm:$0xff]
    %v89 = vld [vmem:[%s2 + $0x68] sm:$0xff]
    %v90 = vld [vmem:[%s2 + $0x70] sm:$0xff]
    %v91 = vld [vmem:[%s2 + $0x78] sm:$0xff]
    %93 = vset.pattern.permute.xlu0 0
    %94 = vperm.xlu0 %93, %v76
    %v95 = vpop.permute.xlu0 %94
    %98 = vset.pattern.permute.xlu0 0
    %99 = vperm.xlu0 %98, %v77
    %v100 = vpop.permute.xlu0 %99
    %103 = vset.pattern.permute.xlu0 0
    %104 = vperm.xlu0 %103, %v78
    %v105 = vpop.permute.xlu0 %104
    %108 = vset.pattern.permute.xlu0 0
    %109 = vperm.xlu0 %108, %v79
    %v110 = vpop.permute.xlu0 %109
    %113 = vset.pattern.permute.xlu0 0
    %114 = vperm.xlu0 %113, %v80
    %v115 = vpop.permute.xlu0 %114
    %118 = vset.pattern.permute.xlu0 0
    %119 = vperm.xlu0 %118, %v81
    %v120 = vpop.permute.xlu0 %119
    %123 = vset.pattern.permute.xlu0 0
    %124 = vperm.xlu0 %123, %v82
    %v125 = vpop.permute.xlu0 %124
    %128 = vset.pattern.permute.xlu0 0
    %129 = vperm.xlu0 %128, %v83
    %v130 = vpop.permute.xlu0 %129
    %133 = vset.pattern.permute.xlu0 0
    %134 = vperm.xlu0 %133, %v84
    %v135 = vpop.permute.xlu0 %134
    %138 = vset.pattern.permute.xlu0 0
    %139 = vperm.xlu0 %138, %v85
    %v140 = vpop.permute.xlu0 %139
    %143 = vset.pattern.permute.xlu0 0
    %144 = vperm.xlu0 %143, %v86
    %v145 = vpop.permute.xlu0 %144
    %148 = vset.pattern.permute.xlu0 0
    %149 = vperm.xlu0 %148, %v87
    %v150 = vpop.permute.xlu0 %149
    %153 = vset.pattern.permute.xlu0 0
    %154 = vperm.xlu0 %153, %v88
    %v155 = vpop.permute.xlu0 %154
    %158 = vset.pattern.permute.xlu0 0
    %159 = vperm.xlu0 %158, %v89
    %v160 = vpop.permute.xlu0 %159
    %163 = vset.pattern.permute.xlu0 0
    %164 = vperm.xlu0 %163, %v90
    %v165 = vpop.permute.xlu0 %164
    %168 = vset.pattern.permute.xlu0 0
    %169 = vperm.xlu0 %168, %v91
    %v170 = vpop.permute.xlu0 %169
    %v188 = vunpack.c.l.b16 %v60
    %v189 = vunpack.c.l.b16 %v61
    %v190 = vunpack.c.l.b16 %v62
    %v191 = vunpack.c.l.b16 %v63
    %v192 = vunpack.c.l.b16 %v64
    %v193 = vunpack.c.l.b16 %v65
    %v194 = vunpack.c.l.b16 %v66
    %v195 = vunpack.c.l.b16 %v67
    %v196 = vunpack.c.l.b16 %v68
    %v197 = vunpack.c.l.b16 %v69
    %v198 = vunpack.c.l.b16 %v70
    %v199 = vunpack.c.l.b16 %v71
    %v200 = vunpack.c.l.b16 %v72
    %v201 = vunpack.c.l.b16 %v73
    %v202 = vunpack.c.l.b16 %v74
    %v203 = vunpack.c.l.b16 %v75
    %v204 = vpack.c.b16 %v189, %v188
    %v205 = vpack.c.b16 %v191, %v190
    %v206 = vpack.c.b16 %v193, %v192
    %v207 = vpack.c.b16 %v195, %v194
    %v208 = vpack.c.b16 %v197, %v196
    %v209 = vpack.c.b16 %v199, %v198
    %v210 = vpack.c.b16 %v201, %v200
    %v211 = vpack.c.b16 %v203, %v202
    %vm212 = vcmask 261120
    %v214 = vsel %vm212, %v204, 0
    %v217 = vsel %vm212, %v205, 0
    %v220 = vsel %vm212, %v206, 0
    %v223 = vsel %vm212, %v207, 0
    %v226 = vsel %vm212, %v208, 0
    %v229 = vsel %vm212, %v209, 0
    %v232 = vsel %vm212, %v210, 0
    %v235 = vsel %vm212, %v211, 0
    %v238 = vsel %vm212, %v52, 0
    %v241 = vsel %vm212, %v53, 0
    %v244 = vsel %vm212, %v54, 0
    %v247 = vsel %vm212, %v55, 0
    %v250 = vsel %vm212, %v56, 0
    %v253 = vsel %vm212, %v57, 0
    %v256 = vsel %vm212, %v58, 0
    %v259 = vsel %vm212, %v59, 0
    %261 = vmatpush.bf16.xpose.msra.mxu0 %v259
    %262 = vmatpush.bf16.xpose.msra.mxu0 %v256
    %263 = vmatpush.bf16.xpose.msra.mxu0 %v253
    %264 = vmatpush.bf16.xpose.msra.mxu0 %v250
    %265 = vmatpush.bf16.xpose.msra.mxu0 %v247
    %266 = vmatpush.bf16.xpose.msra.mxu0 %v244
    %267 = vmatpush.bf16.xpose.msra.mxu0 %v241
    %268 = vmatpush.bf16.xpose.msra.mxu0 %v238
    %269 = vmatmul.bf16.gmra.mxu0 %v214
    %v270 = vpop.f32.mrf.mxu0
    %v271 = vadd.f32 %v95, %v270
    %v272 = vpop.f32.mrf.mxu0
    %v273 = vadd.f32 %v100, %v272
    %274 = vmatmul.bf16.gmra.mxu0 %v217
    %v275 = vpop.f32.mrf.mxu0
    %v276 = vadd.f32 %v105, %v275
    %v277 = vpop.f32.mrf.mxu0
    %v278 = vadd.f32 %v110, %v277
    %279 = vmatmul.bf16.gmra.mxu0 %v220
    %v280 = vpop.f32.mrf.mxu0
    %v281 = vadd.f32 %v115, %v280
    %v282 = vpop.f32.mrf.mxu0
    %v283 = vadd.f32 %v120, %v282
    %284 = vmatmul.bf16.gmra.mxu0 %v223
    %v285 = vpop.f32.mrf.mxu0
    %v286 = vadd.f32 %v125, %v285
    %v287 = vpop.f32.mrf.mxu0
    %v288 = vadd.f32 %v130, %v287
    %289 = vmatmul.bf16.gmra.mxu0 %v226
    %v290 = vpop.f32.mrf.mxu0
    %v291 = vadd.f32 %v135, %v290
    %v292 = vpop.f32.mrf.mxu0
    %v293 = vadd.f32 %v140, %v292
    %294 = vmatmul.bf16.gmra.mxu0 %v229
    %v295 = vpop.f32.mrf.mxu0
    %v296 = vadd.f32 %v145, %v295
    %v297 = vpop.f32.mrf.mxu0
    %v298 = vadd.f32 %v150, %v297
    %299 = vmatmul.bf16.gmra.mxu0 %v232
    %v300 = vpop.f32.mrf.mxu0
    %v301 = vadd.f32 %v155, %v300
    %v302 = vpop.f32.mrf.mxu0
    %v303 = vadd.f32 %v160, %v302
    %304 = vmatmul.bf16.gmra.mxu0 %v235
    %v305 = vpop.f32.mrf.mxu0
    %v306 = vadd.f32 %v165, %v305
    %v307 = vpop.f32.mrf.mxu0
    %v308 = vadd.f32 %v170, %v307
    %309 = vdwg.mxu0
    %v310 = vmax.f32 %v271, 0.0
    %v311 = vmax.f32 %v273, 0.0
    %v312 = vmax.f32 %v276, 0.0
    %v313 = vmax.f32 %v278, 0.0
    %v314 = vmax.f32 %v281, 0.0
    %v315 = vmax.f32 %v283, 0.0
    %v316 = vmax.f32 %v286, 0.0
    %v317 = vmax.f32 %v288, 0.0
    %v318 = vmax.f32 %v291, 0.0
    %v319 = vmax.f32 %v293, 0.0
    %v320 = vmax.f32 %v296, 0.0
    %v321 = vmax.f32 %v298, 0.0
    %v322 = vmax.f32 %v301, 0.0
    %v323 = vmax.f32 %v303, 0.0
    %v324 = vmax.f32 %v306, 0.0
    %v325 = vmax.f32 %v308, 0.0
    %v326 = vld [vmem:[%s3] sm:$0xf]
    %v327 = vld [vmem:[%s3 + $0x4] sm:$0xf]
    %v328 = vld [vmem:[%s3 + $0x8] sm:$0xf]
    %v329 = vld [vmem:[%s3 + $0xc] sm:$0xf]
    %v330 = vld [vmem:[%s3 + $0x10] sm:$0xf]
    %v331 = vld [vmem:[%s3 + $0x14] sm:$0xf]
    %v332 = vld [vmem:[%s3 + $0x18] sm:$0xf]
    %v333 = vld [vmem:[%s3 + $0x1c] sm:$0xf]
    %v334 = vpack.c.bf16 %v311, %v310
    %v335 = vpack.c.bf16 %v313, %v312
    %v336 = vpack.c.bf16 %v315, %v314
    %v337 = vpack.c.bf16 %v317, %v316
    %v338 = vpack.c.bf16 %v319, %v318
    %v339 = vpack.c.bf16 %v321, %v320
    %v340 = vpack.c.bf16 %v323, %v322
    %v341 = vpack.c.bf16 %v325, %v324
    %v342 = vld [vmem:[%s4] sm:$0xff]
    %v343 = vld [vmem:[%s4 + $0x8] sm:$0xff]
    %v344 = vld [vmem:[%s4 + $0x10] sm:$0xff]
    %v345 = vld [vmem:[%s4 + $0x18] sm:$0xff]
    %v346 = vld [vmem:[%s4 + $0x20] sm:$0xff]
    %v347 = vld [vmem:[%s4 + $0x28] sm:$0xff]
    %v348 = vld [vmem:[%s4 + $0x30] sm:$0xff]
    %v349 = vld [vmem:[%s4 + $0x38] sm:$0xff]
    %351 = vset.pattern.permute.xlu0 0
    %352 = vperm.xlu0 %351, %v342
    %v353 = vpop.permute.xlu0 %352
    %356 = vset.pattern.permute.xlu0 0
    %357 = vperm.xlu0 %356, %v343
    %v358 = vpop.permute.xlu0 %357
    %361 = vset.pattern.permute.xlu0 0
    %362 = vperm.xlu0 %361, %v344
    %v363 = vpop.permute.xlu0 %362
    %366 = vset.pattern.permute.xlu0 0
    %367 = vperm.xlu0 %366, %v345
    %v368 = vpop.permute.xlu0 %367
    %371 = vset.pattern.permute.xlu0 0
    %372 = vperm.xlu0 %371, %v346
    %v373 = vpop.permute.xlu0 %372
    %376 = vset.pattern.permute.xlu0 0
    %377 = vperm.xlu0 %376, %v347
    %v378 = vpop.permute.xlu0 %377
    %381 = vset.pattern.permute.xlu0 0
    %382 = vperm.xlu0 %381, %v348
    %v383 = vpop.permute.xlu0 %382
    %386 = vset.pattern.permute.xlu0 0
    %387 = vperm.xlu0 %386, %v349
    %v388 = vpop.permute.xlu0 %387
    %v398 = vunpack.c.l.b16 %v326
    %v399 = vunpack.c.l.b16 %v327
    %v400 = vunpack.c.l.b16 %v328
    %v401 = vunpack.c.l.b16 %v329
    %v402 = vunpack.c.l.b16 %v330
    %v403 = vunpack.c.l.b16 %v331
    %v404 = vunpack.c.l.b16 %v332
    %v405 = vunpack.c.l.b16 %v333
    %v406 = vpack.c.b16 %v399, %v398
    %v407 = vpack.c.b16 %v401, %v400
    %v408 = vpack.c.b16 %v403, %v402
    %v409 = vpack.c.b16 %v405, %v404
    %414 = vmatpush.bf16.msra.mxu0 %v341
    %415 = vmatpush.bf16.msra.mxu0 %v340
    %416 = vmatpush.bf16.msra.mxu0 %v339
    %417 = vmatpush.bf16.msra.mxu0 %v338
    %418 = vmatpush.bf16.msra.mxu0 %v337
    %419 = vmatpush.bf16.msra.mxu0 %v336
    %420 = vmatpush.bf16.msra.mxu0 %v335
    %421 = vmatpush.bf16.msra.mxu0 %v334
    %422 = vmatmul.bf16.gmra.mxu0 %v406
    %v423 = vpop.f32.mrf.mxu0
    %v424 = vadd.f32 %v353, %v423
    %v425 = vpop.f32.mrf.mxu0
    %v426 = vadd.f32 %v358, %v425
    %427 = vmatmul.bf16.gmra.mxu0 %v407
    %v428 = vpop.f32.mrf.mxu0
    %v429 = vadd.f32 %v363, %v428
    %v430 = vpop.f32.mrf.mxu0
    %v431 = vadd.f32 %v368, %v430
    %432 = vmatmul.bf16.gmra.mxu0 %v408
    %v433 = vpop.f32.mrf.mxu0
    %v434 = vadd.f32 %v373, %v433
    %v435 = vpop.f32.mrf.mxu0
    %v436 = vadd.f32 %v378, %v435
    %437 = vmatmul.bf16.gmra.mxu0 %v409
    %v438 = vpop.f32.mrf.mxu0
    %v439 = vadd.f32 %v383, %v438
    %v440 = vpop.f32.mrf.mxu0
    %v441 = vadd.f32 %v388, %v440
    %442 = vdwg.mxu0
    %v443 = vmax.f32 %v424, 0.0
    %v444 = vmax.f32 %v426, 0.0
    %v445 = vmax.f32 %v429, 0.0
    %v446 = vmax.f32 %v431, 0.0
    %v447 = vmax.f32 %v434, 0.0
    %v448 = vmax.f32 %v436, 0.0
    %v449 = vmax.f32 %v439, 0.0
    %v450 = vmax.f32 %v441, 0.0
    %v451 = vld [vmem:[%s5] sm:$0xf]
    %v452 = vld [vmem:[%s5 + $0x4] sm:$0xf]
    %v453 = vld [vmem:[%s5 + $0x8] sm:$0xf]
    %v454 = vld [vmem:[%s5 + $0xc] sm:$0xf]
    %v455 = vpack.c.bf16 %v444, %v443
    %v456 = vpack.c.bf16 %v446, %v445
    %v457 = vpack.c.bf16 %v448, %v447
    %v458 = vpack.c.bf16 %v450, %v449
    %v459 = vld [vmem:[%s6] sm:$0xff]
    %v460 = vld [vmem:[%s6 + $0x8] sm:$0xff]
    %v461 = vld [vmem:[%s6 + $0x10] sm:$0xff]
    %v462 = vld [vmem:[%s6 + $0x18] sm:$0xff]
    %464 = vset.pattern.permute.xlu0 0
    %465 = vperm.xlu0 %464, %v459
    %v466 = vpop.permute.xlu0 %465
    %469 = vset.pattern.permute.xlu0 0
    %470 = vperm.xlu0 %469, %v460
    %v471 = vpop.permute.xlu0 %470
    %474 = vset.pattern.permute.xlu0 0
    %475 = vperm.xlu0 %474, %v461
    %v476 = vpop.permute.xlu0 %475
    %479 = vset.pattern.permute.xlu0 0
    %480 = vperm.xlu0 %479, %v462
    %v481 = vpop.permute.xlu0 %480
    %v487 = vunpack.c.l.b16 %v451
    %v488 = vunpack.c.l.b16 %v452
    %v489 = vunpack.c.l.b16 %v453
    %v490 = vunpack.c.l.b16 %v454
    %v491 = vpack.c.b16 %v488, %v487
    %v492 = vpack.c.b16 %v490, %v489
    %vm493 = vcmask 523264
    %v495 = vsel %vm493, %v491, 0
    %v498 = vsel %vm493, %v492, 0
    %500 = vmatpush.bf16.msra.mxu0 0
    %501 = vmatpush.bf16.msra.mxu0 0
    %502 = vmatpush.bf16.msra.mxu0 0
    %503 = vmatpush.bf16.msra.mxu0 0
    %504 = vmatpush.bf16.msra.mxu0 %v458
    %505 = vmatpush.bf16.msra.mxu0 %v457
    %506 = vmatpush.bf16.msra.mxu0 %v456
    %507 = vmatpush.bf16.msra.mxu0 %v455
    %508 = vmatmul.bf16.gmra.mxu0 %v495
    %v509 = vpop.f32.mrf.mxu0
    %v510 = vadd.f32 %v466, %v509
    %v511 = vpop.f32.mrf.mxu0
    %v512 = vadd.f32 %v471, %v511
    %513 = vmatmul.bf16.gmra.mxu0 %v498
    %v514 = vpop.f32.mrf.mxu0
    %v515 = vadd.f32 %v476, %v514
    %v516 = vpop.f32.mrf.mxu0
    %v517 = vadd.f32 %v481, %v516
    %518 = vdwg.mxu0
    %v519 = vmax.f32 %v510, 0.0
    %v520 = vmax.f32 %v512, 0.0
    %v521 = vmax.f32 %v515, 0.0
    %v522 = vmax.f32 %v517, 0.0
    %v523 = vld [vmem:[%s7] sm:$0x1]
    %v524 = vpack.c.bf16 %v520, %v519
    %v525 = vpack.c.bf16 %v522, %v521
    %v526 = vld [vmem:[#allocation2] sm:$0x1]
    %528 = vset.pattern.permute.xlu0 0
    %529 = vperm.xlu0 %528, %v526
    %v530 = vpop.permute.xlu0 %529
    %v532 = vperm.slane %v530, 0
    %v534 = vsel %vm212, %v523, 0
    %536 = vmatpush.bf16.msra.mxu0 0
    %537 = vmatpush.bf16.msra.mxu0 0
    %538 = vmatpush.bf16.msra.mxu0 0
    %539 = vmatpush.bf16.msra.mxu0 0
    %540 = vmatpush.bf16.msra.mxu0 0
    %541 = vmatpush.bf16.msra.mxu0 0
    %542 = vmatpush.bf16.msra.mxu0 %v525
    %543 = vmatpush.bf16.msra.mxu0 %v524
    %544 = vmatmul.bf16.gmra.mxu0 %v534
    %v545 = vpop.f32.mrf.mxu0
    %v546 = vadd.f32 %v532, %v545
    %v547 = vpop.f32.mrf.mxu0
    %548 = vdwg.mxu0
    %v549 = vxor.u32 %v546, 2147483648
    %v550 = vmul.f32 %v549, 1.442695
    %v551 = vpow.pop %v550
    %v552 = vadd.f32 %v551, 1.0
    %v553 = vrcp.pop %v552
    %v554 = vmul.f32 %v552, %v553
    %v555 = vsub.f32 1.0, %v554
    %v556 = vmul.f32 %v553, %v555
    %v557 = vadd.f32 %v553, %v556
    %vm558 = vweird.f32 %v552
    %vm559 = vweird.f32 %v553
    %vm560 = vmor %vm558, %vm559
    %v561 = vsel %vm560, %v553, %v557
    %v562 = vand.u32 2147483647, %v552
    %vm563 = vcmp.eq.f32.partialorder %v562, 8.507059e+37
    %v564 = vand.u32 %v552, 2147483648
    %v565 = vor.u32 1.1754944e-38, %v564
    %v566 = vsel %vm563, %v565, %v561
    %v567 = vmul.f32 1.0, %v566
    %568 = vst [vmem:[#allocation3] sm:$0x1] %v567
    // Predicated region
    $region38: #{tpu_custom_call.1} parent=1 // pred_check
      _
    $region39: #{tpu_custom_call.1} parent=1 // pred_check_branch
      %570 = sbr.rel (0) target = $region41
    $region40: #{tpu_custom_call.1} parent=1 // pred_region
      %572 = vsyncadd [#allocation4], 0
      %s574 = sshll.u32 [#allocation3], 4
      %s575 = int_to_ptr.vmem [resolvable:$true] %s574
      %s576 = sshll.u32 %s9, 4
      %s577 = int_to_ptr.hbm [resolvable:$true] %s576
      %579 = dma.vmem_to_hbm [thread:$0]  %s575, 16, %s577, [#allocation4]
    $region41: #{tpu_custom_call.1} parent=1 // pred_fallthru
      _
    // Predicated region
    $region42: #{tpu_custom_call.1} parent=1 // pred_check
      _
    $region43: #{tpu_custom_call.1} parent=1 // pred_check_branch
      %581 = sbr.rel (0) target = $region45
    $region44: #{tpu_custom_call.1} parent=1 // pred_region
      %583 = dma.done [#allocation4], 16
    $region45: #{tpu_custom_call.1} parent=1 // pred_fallthru
      _
    %584 = vsyncpa [#allocation4], 1

</llo_original>
